<compile_context>
chip_gen: v7x
topology: tpu7x:2x2x1
jax: 0.10.0
libtpu: 0.0.40
codegen_flags: <defaults>
</compile_context>

<pallas_src>
import jax
import jax.numpy as jnp
from jax import lax
from jax.experimental import pallas as pl
from jax.experimental.pallas import tpu as pltpu


def lstm_head_kernel(x_ref, len_ref, wih_ref, whh_ref, b_ref,
                     wout_ref, bout_ref, out_ref):
    """Single-layer LSTM recurrence + linear head + log_softmax.

    Gate column order in wih/whh/b is (i, f, o, g).

    x_ref:    (T*Bp, E) f32   time-major, flattened (rows t*Bp .. t*Bp+Bp-1 are step t)
    len_ref:  (Bp, 1)   i32   sequence lengths (padded batch rows have length 0)
    wih_ref:  (E, 4H)   whh_ref: (H, 4H)   b_ref: (1, 4H)  (b_ih + b_hh pre-summed)
    wout_ref: (H, O)    bout_ref: (1, O)
    out_ref:  (Bp, O)   log-softmax output
    """
    Bp = out_ref.shape[0]
    T = x_ref.shape[0] // Bp
    H = whh_ref.shape[0]

    # Hoisted reads (done once) + one big matmul for the input projection of every step.
    whh = whh_ref[...]
    lens = len_ref[...]                                              # (Bp, 1) int32
    xw = (jnp.dot(x_ref[...], wih_ref[...],
                  preferred_element_type=jnp.float32)
          + b_ref[...])                                              # (T*Bp, 4H)

    h = jnp.zeros((Bp, H), jnp.float32)
    c = jnp.zeros((Bp, H), jnp.float32)

    # Fully unrolled recurrence: states live in vregs, no per-step VMEM traffic.
    for t in range(T):
        g = xw[t * Bp:(t + 1) * Bp, :] + jnp.dot(
            h, whh, preferred_element_type=jnp.float32)              # (Bp, 4H)
        sig = jax.nn.sigmoid(g[:, 0:3 * H])                          # i | f | o  (1 EUP pass)
        g_t = jnp.tanh(g[:, 3 * H:4 * H])                            # g          (1 EUP pass)
        i_g = sig[:, 0 * H:1 * H]
        f_g = sig[:, 1 * H:2 * H]
        o_g = sig[:, 2 * H:3 * H]
        c_new = f_g * c + i_g * g_t
        h_new = o_g * jnp.tanh(c_new)
        m = lens > t                                                 # (Bp, 1) bool
        c = jnp.where(m, c_new, c)
        h = jnp.where(m, h_new, h)

    # Head on h_n (PyTorch: self.h[-2] == h_n for the single layer), then log_softmax.
    logits = (jnp.dot(h, wout_ref[...], preferred_element_type=jnp.float32)
              + bout_ref[...])
    mx = jnp.max(logits, axis=-1, keepdims=True)
    shifted = logits - mx
    lse = jnp.log(jnp.sum(jnp.exp(shifted), axis=-1, keepdims=True))
    out_ref[...] = shifted - lse


def _reorder_gates(w, H):
    """PyTorch gate order (i, f, g, o) -> (i, f, o, g) along the last axis."""
    return jnp.concatenate(
        [w[..., :2 * H], w[..., 3 * H:4 * H], w[..., 2 * H:3 * H]], axis=-1)


def model13_forward(seq, lengths, params):
    """seq: (T, B, E) f32 time-major, lengths: (B,) int32 (torch-style)."""
    T, B, E = seq.shape
    H = params["whh"].shape[0]
    O = params["wout"].shape[1]

    # Pad the batch to the 8-sublane width so every vreg is fully occupied.
    Bp = ((B + 7) // 8) * 8
    if Bp != B:
        seq = jnp.pad(seq, ((0, 0), (0, Bp - B), (0, 0)))
        lengths = jnp.pad(lengths, (0, Bp - B))   # padded rows: length 0 -> state stays 0

    x_flat = seq.reshape(T * Bp, E)
    len2d = lengths.reshape(Bp, 1).astype(jnp.int32)

    wih = _reorder_gates(params["wih"], H)
    whh = _reorder_gates(params["whh"], H)
    b = _reorder_gates(params["b"], H)

    vmem = pl.BlockSpec(memory_space=pltpu.MemorySpace.VMEM)
    out = pl.pallas_call(
        lstm_head_kernel,
        out_shape=jax.ShapeDtypeStruct((Bp, O), jnp.float32),
        in_specs=[vmem] * 7,
        out_specs=vmem,
    )(x_flat, len2d, wih, whh, b, params["wout"], params["bout"])
    return out[:B]


def reference_forward(seq, lengths, params):
    """Pure-JAX reference (standard PyTorch gate order) for correctness checking."""
    T, B, E = seq.shape
    H = params["whh"].shape[0]
    mask = (jnp.arange(T)[:, None] < lengths[None, :]).astype(jnp.float32)[..., None]

    def step(carry, inp):
        h, c = carry
        x_t, m_t = inp
        g = x_t @ params["wih"] + h @ params["whh"] + params["b"]
        i = jax.nn.sigmoid(g[:, 0 * H:1 * H])
        f = jax.nn.sigmoid(g[:, 1 * H:2 * H])
        gg = jnp.tanh(g[:, 2 * H:3 * H])
        o = jax.nn.sigmoid(g[:, 3 * H:4 * H])
        c_new = f * c + i * gg
        h_new = o * jnp.tanh(c_new)
        h = m_t * h_new + (1.0 - m_t) * h
        c = m_t * c_new + (1.0 - m_t) * c
        return (h, c), None

    init = (jnp.zeros((B, H), jnp.float32), jnp.zeros((B, H), jnp.float32))
    (h, c), _ = lax.scan(step, init, (seq, mask))
    logits = h @ params["wout"] + params["bout"]
    return jax.nn.log_softmax(logits, axis=-1)


def init_params(key, E, H, O):
    ks = jax.random.split(key, 8)
    bound = 1.0 / jnp.sqrt(H)
    u = lambda k, shp: jax.random.uniform(k, shp, jnp.float32, -bound, bound)
    # Stored pre-transposed: (in, 4H) / (H, out); LSTM biases pre-summed (b_ih + b_hh).
    # Gate order here is the PyTorch standard (i, f, g, o); the wrapper reorders.
    return {
        "wih": u(ks[0], (E, 4 * H)),
        "whh": u(ks[1], (H, 4 * H)),
        "b":   u(ks[2], (1, 4 * H)) + u(ks[3], (1, 4 * H)),
        "wout": u(ks[4], (H, O)),
        "bout": u(ks[5], (1, O)),
    }


if __name__ == "__main__":
    # Small shapes consistent with the module: embedding_dim=16, n_hidden=32,
    # n_out=8, single LSTM layer, seq len T=8, batch B=4.
    T, B, E, H, O = 8, 4, 16, 32, 8

    key = jax.random.PRNGKey(0)
    k_seq, k_par = jax.random.split(key)
    seq = jax.random.normal(k_seq, (T, B, E), jnp.float32)   # (T, B, E), time-major
    lengths = jnp.array([8, 6, 5, 3], dtype=jnp.int32)       # sorted descending (torch-style)
    params = init_params(k_par, E, H, O)

    out = jax.block_until_ready(model13_forward(seq, lengths, params))
    ref = jax.block_until_ready(reference_forward(seq, lengths, params))

    assert out.shape == (B, O), out.shape
    assert jnp.allclose(out, ref, rtol=1e-5, atol=1e-5), "mismatch vs reference"
    print("KERNEL_OK")
</pallas_src>

<mosaic_0001>
module attributes {stable_mosaic.version = 11 : i64} {
  func.func @lstm_head_kernel(%arg0: memref<64x16xf32, #tpu.memory_space<vmem>>, %arg1: memref<8x1xi32, #tpu.memory_space<vmem>>, %arg2: memref<16x128xf32, #tpu.memory_space<vmem>>, %arg3: memref<32x128xf32, #tpu.memory_space<vmem>>, %arg4: memref<1x128xf32, #tpu.memory_space<vmem>>, %arg5: memref<32x8xf32, #tpu.memory_space<vmem>>, %arg6: memref<1x8xf32, #tpu.memory_space<vmem>>, %arg7: memref<8x8xf32, #tpu.memory_space<vmem>>) attributes {dimension_semantics = [], scalar_prefetch = 0 : i64, scratch_operands = 0 : i64, tpu.core_type = #tpu.core_type<tc>} {
    %c0 = arith.constant 0 : index
    %c0_0 = arith.constant 0 : index
    %0 = vector.load %arg3[%c0, %c0_0] : memref<32x128xf32, #tpu.memory_space<vmem>>, vector<32x128xf32>
    %c0_1 = arith.constant 0 : index
    %c0_2 = arith.constant 0 : index
    %1 = vector.load %arg1[%c0_1, %c0_2] : memref<8x1xi32, #tpu.memory_space<vmem>>, vector<8x1xi32>
    %c0_3 = arith.constant 0 : index
    %c0_4 = arith.constant 0 : index
    %2 = vector.load %arg0[%c0_3, %c0_4] : memref<64x16xf32, #tpu.memory_space<vmem>>, vector<64x16xf32>
    %c0_5 = arith.constant 0 : index
    %c0_6 = arith.constant 0 : index
    %3 = vector.load %arg2[%c0_5, %c0_6] : memref<16x128xf32, #tpu.memory_space<vmem>>, vector<16x128xf32>
    %cst = arith.constant dense<0.000000e+00> : vector<64x128xf32>
    %4 = tpu.matmul %2, %3, %cst {dimension_numbers = #tpu.dot_dimension_numbers<[1], [0], [0], [1], [0, 0, 1, 1], [], []>} : vector<64x16xf32>, vector<16x128xf32>, vector<64x128xf32> -> vector<64x128xf32>
    %c0_7 = arith.constant 0 : index
    %c0_8 = arith.constant 0 : index
    %5 = vector.load %arg4[%c0_7, %c0_8] : memref<1x128xf32, #tpu.memory_space<vmem>>, vector<1x128xf32>
    %6 = vector.broadcast %5 : vector<1x128xf32> to vector<64x128xf32>
    %7 = arith.addf %4, %6 : vector<64x128xf32>
    %cst_9 = arith.constant 0.000000e+00 : f32
    %8 = vector.broadcast %cst_9 : f32 to vector<8x32xf32>
    %cst_10 = arith.constant 0.000000e+00 : f32
    %9 = vector.broadcast %cst_10 : f32 to vector<8x32xf32>
    %10 = vector.extract_strided_slice %7 {offsets = [0, 0], sizes = [8, 128], strides = [1, 1]} : vector<64x128xf32> to vector<8x128xf32>
    %cst_11 = arith.constant dense<0.000000e+00> : vector<8x128xf32>
    %11 = tpu.matmul %8, %0, %cst_11 {dimension_numbers = #tpu.dot_dimension_numbers<[1], [0], [0], [1], [0, 0, 1, 1], [], []>} : vector<8x32xf32>, vector<32x128xf32>, vector<8x128xf32> -> vector<8x128xf32>
    %12 = arith.addf %10, %11 : vector<8x128xf32>
    %13 = vector.extract_strided_slice %12 {offsets = [0, 0], sizes = [8, 96], strides = [1, 1]} : vector<8x128xf32> to vector<8x96xf32>
    %14 = arith.negf %13 : vector<8x96xf32>
    %15 = math.exp %14 : vector<8x96xf32>
    %cst_12 = arith.constant 1.000000e+00 : f32
    %16 = vector.broadcast %cst_12 : f32 to vector<8x96xf32>
    %17 = arith.addf %16, %15 : vector<8x96xf32>
    %18 = arith.divf %16, %17 : vector<8x96xf32>
    %19 = vector.extract_strided_slice %12 {offsets = [0, 96], sizes = [8, 32], strides = [1, 1]} : vector<8x128xf32> to vector<8x32xf32>
    %20 = math.tanh %19 : vector<8x32xf32>
    %21 = vector.extract_strided_slice %18 {offsets = [0, 0], sizes = [8, 32], strides = [1, 1]} : vector<8x96xf32> to vector<8x32xf32>
    %22 = vector.extract_strided_slice %18 {offsets = [0, 32], sizes = [8, 32], strides = [1, 1]} : vector<8x96xf32> to vector<8x32xf32>
    %23 = vector.extract_strided_slice %18 {offsets = [0, 64], sizes = [8, 32], strides = [1, 1]} : vector<8x96xf32> to vector<8x32xf32>
    %24 = arith.mulf %22, %9 : vector<8x32xf32>
    %25 = arith.mulf %21, %20 : vector<8x32xf32>
    %26 = arith.addf %24, %25 : vector<8x32xf32>
    %27 = math.tanh %26 : vector<8x32xf32>
    %28 = arith.mulf %23, %27 : vector<8x32xf32>
    %c0_i32 = arith.constant 0 : i32
    %29 = vector.broadcast %c0_i32 : i32 to vector<8x1xi32>
    %30 = arith.cmpi sgt, %1, %29 : vector<8x1xi32>
    %31 = vector.shape_cast %30 : vector<8x1xi1> to vector<8x1xi1>
    %32 = vector.broadcast %31 : vector<8x1xi1> to vector<8x32xi1>
    %33 = arith.select %32, %26, %9 : vector<8x32xi1>, vector<8x32xf32>
    %34 = vector.shape_cast %30 : vector<8x1xi1> to vector<8x1xi1>
    %35 = vector.broadcast %34 : vector<8x1xi1> to vector<8x32xi1>
    %36 = arith.select %35, %28, %8 : vector<8x32xi1>, vector<8x32xf32>
    %37 = vector.extract_strided_slice %7 {offsets = [8, 0], sizes = [8, 128], strides = [1, 1]} : vector<64x128xf32> to vector<8x128xf32>
    %cst_13 = arith.constant dense<0.000000e+00> : vector<8x128xf32>
    %38 = tpu.matmul %36, %0, %cst_13 {dimension_numbers = #tpu.dot_dimension_numbers<[1], [0], [0], [1], [0, 0, 1, 1], [], []>} : vector<8x32xf32>, vector<32x128xf32>, vector<8x128xf32> -> vector<8x128xf32>
    %39 = arith.addf %37, %38 : vector<8x128xf32>
    %40 = vector.extract_strided_slice %39 {offsets = [0, 0], sizes = [8, 96], strides = [1, 1]} : vector<8x128xf32> to vector<8x96xf32>
    %41 = arith.negf %40 : vector<8x96xf32>
    %42 = math.exp %41 : vector<8x96xf32>
    %cst_14 = arith.constant 1.000000e+00 : f32
    %43 = vector.broadcast %cst_14 : f32 to vector<8x96xf32>
    %44 = arith.addf %43, %42 : vector<8x96xf32>
    %45 = arith.divf %43, %44 : vector<8x96xf32>
    %46 = vector.extract_strided_slice %39 {offsets = [0, 96], sizes = [8, 32], strides = [1, 1]} : vector<8x128xf32> to vector<8x32xf32>
    %47 = math.tanh %46 : vector<8x32xf32>
    %48 = vector.extract_strided_slice %45 {offsets = [0, 0], sizes = [8, 32], strides = [1, 1]} : vector<8x96xf32> to vector<8x32xf32>
    %49 = vector.extract_strided_slice %45 {offsets = [0, 32], sizes = [8, 32], strides = [1, 1]} : vector<8x96xf32> to vector<8x32xf32>
    %50 = vector.extract_strided_slice %45 {offsets = [0, 64], sizes = [8, 32], strides = [1, 1]} : vector<8x96xf32> to vector<8x32xf32>
    %51 = arith.mulf %49, %33 : vector<8x32xf32>
    %52 = arith.mulf %48, %47 : vector<8x32xf32>
    %53 = arith.addf %51, %52 : vector<8x32xf32>
    %54 = math.tanh %53 : vector<8x32xf32>
    %55 = arith.mulf %50, %54 : vector<8x32xf32>
    %c1_i32 = arith.constant 1 : i32
    %56 = vector.broadcast %c1_i32 : i32 to vector<8x1xi32>
    %57 = arith.cmpi sgt, %1, %56 : vector<8x1xi32>
    %58 = vector.shape_cast %57 : vector<8x1xi1> to vector<8x1xi1>
    %59 = vector.broadcast %58 : vector<8x1xi1> to vector<8x32xi1>
    %60 = arith.select %59, %53, %33 : vector<8x32xi1>, vector<8x32xf32>
    %61 = vector.shape_cast %57 : vector<8x1xi1> to vector<8x1xi1>
    %62 = vector.broadcast %61 : vector<8x1xi1> to vector<8x32xi1>
    %63 = arith.select %62, %55, %36 : vector<8x32xi1>, vector<8x32xf32>
    %64 = vector.extract_strided_slice %7 {offsets = [16, 0], sizes = [8, 128], strides = [1, 1]} : vector<64x128xf32> to vector<8x128xf32>
    %cst_15 = arith.constant dense<0.000000e+00> : vector<8x128xf32>
    %65 = tpu.matmul %63, %0, %cst_15 {dimension_numbers = #tpu.dot_dimension_numbers<[1], [0], [0], [1], [0, 0, 1, 1], [], []>} : vector<8x32xf32>, vector<32x128xf32>, vector<8x128xf32> -> vector<8x128xf32>
    %66 = arith.addf %64, %65 : vector<8x128xf32>
    %67 = vector.extract_strided_slice %66 {offsets = [0, 0], sizes = [8, 96], strides = [1, 1]} : vector<8x128xf32> to vector<8x96xf32>
    %68 = arith.negf %67 : vector<8x96xf32>
    %69 = math.exp %68 : vector<8x96xf32>
    %cst_16 = arith.constant 1.000000e+00 : f32
    %70 = vector.broadcast %cst_16 : f32 to vector<8x96xf32>
    %71 = arith.addf %70, %69 : vector<8x96xf32>
    %72 = arith.divf %70, %71 : vector<8x96xf32>
    %73 = vector.extract_strided_slice %66 {offsets = [0, 96], sizes = [8, 32], strides = [1, 1]} : vector<8x128xf32> to vector<8x32xf32>
    %74 = math.tanh %73 : vector<8x32xf32>
    %75 = vector.extract_strided_slice %72 {offsets = [0, 0], sizes = [8, 32], strides = [1, 1]} : vector<8x96xf32> to vector<8x32xf32>
    %76 = vector.extract_strided_slice %72 {offsets = [0, 32], sizes = [8, 32], strides = [1, 1]} : vector<8x96xf32> to vector<8x32xf32>
    %77 = vector.extract_strided_slice %72 {offsets = [0, 64], sizes = [8, 32], strides = [1, 1]} : vector<8x96xf32> to vector<8x32xf32>
    %78 = arith.mulf %76, %60 : vector<8x32xf32>
    %79 = arith.mulf %75, %74 : vector<8x32xf32>
    %80 = arith.addf %78, %79 : vector<8x32xf32>
    %81 = math.tanh %80 : vector<8x32xf32>
    %82 = arith.mulf %77, %81 : vector<8x32xf32>
    %c2_i32 = arith.constant 2 : i32
    %83 = vector.broadcast %c2_i32 : i32 to vector<8x1xi32>
    %84 = arith.cmpi sgt, %1, %83 : vector<8x1xi32>
    %85 = vector.shape_cast %84 : vector<8x1xi1> to vector<8x1xi1>
    %86 = vector.broadcast %85 : vector<8x1xi1> to vector<8x32xi1>
    %87 = arith.select %86, %80, %60 : vector<8x32xi1>, vector<8x32xf32>
    %88 = vector.shape_cast %84 : vector<8x1xi1> to vector<8x1xi1>
    %89 = vector.broadcast %88 : vector<8x1xi1> to vector<8x32xi1>
    %90 = arith.select %89, %82, %63 : vector<8x32xi1>, vector<8x32xf32>
    %91 = vector.extract_strided_slice %7 {offsets = [24, 0], sizes = [8, 128], strides = [1, 1]} : vector<64x128xf32> to vector<8x128xf32>
    %cst_17 = arith.constant dense<0.000000e+00> : vector<8x128xf32>
    %92 = tpu.matmul %90, %0, %cst_17 {dimension_numbers = #tpu.dot_dimension_numbers<[1], [0], [0], [1], [0, 0, 1, 1], [], []>} : vector<8x32xf32>, vector<32x128xf32>, vector<8x128xf32> -> vector<8x128xf32>
    %93 = arith.addf %91, %92 : vector<8x128xf32>
    %94 = vector.extract_strided_slice %93 {offsets = [0, 0], sizes = [8, 96], strides = [1, 1]} : vector<8x128xf32> to vector<8x96xf32>
    %95 = arith.negf %94 : vector<8x96xf32>
    %96 = math.exp %95 : vector<8x96xf32>
    %cst_18 = arith.constant 1.000000e+00 : f32
    %97 = vector.broadcast %cst_18 : f32 to vector<8x96xf32>
    %98 = arith.addf %97, %96 : vector<8x96xf32>
    %99 = arith.divf %97, %98 : vector<8x96xf32>
    %100 = vector.extract_strided_slice %93 {offsets = [0, 96], sizes = [8, 32], strides = [1, 1]} : vector<8x128xf32> to vector<8x32xf32>
    %101 = math.tanh %100 : vector<8x32xf32>
    %102 = vector.extract_strided_slice %99 {offsets = [0, 0], sizes = [8, 32], strides = [1, 1]} : vector<8x96xf32> to vector<8x32xf32>
    %103 = vector.extract_strided_slice %99 {offsets = [0, 32], sizes = [8, 32], strides = [1, 1]} : vector<8x96xf32> to vector<8x32xf32>
    %104 = vector.extract_strided_slice %99 {offsets = [0, 64], sizes = [8, 32], strides = [1, 1]} : vector<8x96xf32> to vector<8x32xf32>
    %105 = arith.mulf %103, %87 : vector<8x32xf32>
    %106 = arith.mulf %102, %101 : vector<8x32xf32>
    %107 = arith.addf %105, %106 : vector<8x32xf32>
    %108 = math.tanh %107 : vector<8x32xf32>
    %109 = arith.mulf %104, %108 : vector<8x32xf32>
    %c3_i32 = arith.constant 3 : i32
    %110 = vector.broadcast %c3_i32 : i32 to vector<8x1xi32>
    %111 = arith.cmpi sgt, %1, %110 : vector<8x1xi32>
    %112 = vector.shape_cast %111 : vector<8x1xi1> to vector<8x1xi1>
    %113 = vector.broadcast %112 : vector<8x1xi1> to vector<8x32xi1>
    %114 = arith.select %113, %107, %87 : vector<8x32xi1>, vector<8x32xf32>
    %115 = vector.shape_cast %111 : vector<8x1xi1> to vector<8x1xi1>
    %116 = vector.broadcast %115 : vector<8x1xi1> to vector<8x32xi1>
    %117 = arith.select %116, %109, %90 : vector<8x32xi1>, vector<8x32xf32>
    %118 = vector.extract_strided_slice %7 {offsets = [32, 0], sizes = [8, 128], strides = [1, 1]} : vector<64x128xf32> to vector<8x128xf32>
    %cst_19 = arith.constant dense<0.000000e+00> : vector<8x128xf32>
    %119 = tpu.matmul %117, %0, %cst_19 {dimension_numbers = #tpu.dot_dimension_numbers<[1], [0], [0], [1], [0, 0, 1, 1], [], []>} : vector<8x32xf32>, vector<32x128xf32>, vector<8x128xf32> -> vector<8x128xf32>
    %120 = arith.addf %118, %119 : vector<8x128xf32>
    %121 = vector.extract_strided_slice %120 {offsets = [0, 0], sizes = [8, 96], strides = [1, 1]} : vector<8x128xf32> to vector<8x96xf32>
    %122 = arith.negf %121 : vector<8x96xf32>
    %123 = math.exp %122 : vector<8x96xf32>
    %cst_20 = arith.constant 1.000000e+00 : f32
    %124 = vector.broadcast %cst_20 : f32 to vector<8x96xf32>
    %125 = arith.addf %124, %123 : vector<8x96xf32>
    %126 = arith.divf %124, %125 : vector<8x96xf32>
    %127 = vector.extract_strided_slice %120 {offsets = [0, 96], sizes = [8, 32], strides = [1, 1]} : vector<8x128xf32> to vector<8x32xf32>
    %128 = math.tanh %127 : vector<8x32xf32>
    %129 = vector.extract_strided_slice %126 {offsets = [0, 0], sizes = [8, 32], strides = [1, 1]} : vector<8x96xf32> to vector<8x32xf32>
    %130 = vector.extract_strided_slice %126 {offsets = [0, 32], sizes = [8, 32], strides = [1, 1]} : vector<8x96xf32> to vector<8x32xf32>
    %131 = vector.extract_strided_slice %126 {offsets = [0, 64], sizes = [8, 32], strides = [1, 1]} : vector<8x96xf32> to vector<8x32xf32>
    %132 = arith.mulf %130, %114 : vector<8x32xf32>
    %133 = arith.mulf %129, %128 : vector<8x32xf32>
    %134 = arith.addf %132, %133 : vector<8x32xf32>
    %135 = math.tanh %134 : vector<8x32xf32>
    %136 = arith.mulf %131, %135 : vector<8x32xf32>
    %c4_i32 = arith.constant 4 : i32
    %137 = vector.broadcast %c4_i32 : i32 to vector<8x1xi32>
    %138 = arith.cmpi sgt, %1, %137 : vector<8x1xi32>
    %139 = vector.shape_cast %138 : vector<8x1xi1> to vector<8x1xi1>
    %140 = vector.broadcast %139 : vector<8x1xi1> to vector<8x32xi1>
    %141 = arith.select %140, %134, %114 : vector<8x32xi1>, vector<8x32xf32>
    %142 = vector.shape_cast %138 : vector<8x1xi1> to vector<8x1xi1>
    %143 = vector.broadcast %142 : vector<8x1xi1> to vector<8x32xi1>
    %144 = arith.select %143, %136, %117 : vector<8x32xi1>, vector<8x32xf32>
    %145 = vector.extract_strided_slice %7 {offsets = [40, 0], sizes = [8, 128], strides = [1, 1]} : vector<64x128xf32> to vector<8x128xf32>
    %cst_21 = arith.constant dense<0.000000e+00> : vector<8x128xf32>
    %146 = tpu.matmul %144, %0, %cst_21 {dimension_numbers = #tpu.dot_dimension_numbers<[1], [0], [0], [1], [0, 0, 1, 1], [], []>} : vector<8x32xf32>, vector<32x128xf32>, vector<8x128xf32> -> vector<8x128xf32>
    %147 = arith.addf %145, %146 : vector<8x128xf32>
    %148 = vector.extract_strided_slice %147 {offsets = [0, 0], sizes = [8, 96], strides = [1, 1]} : vector<8x128xf32> to vector<8x96xf32>
    %149 = arith.negf %148 : vector<8x96xf32>
    %150 = math.exp %149 : vector<8x96xf32>
    %cst_22 = arith.constant 1.000000e+00 : f32
    %151 = vector.broadcast %cst_22 : f32 to vector<8x96xf32>
    %152 = arith.addf %151, %150 : vector<8x96xf32>
    %153 = arith.divf %151, %152 : vector<8x96xf32>
    %154 = vector.extract_strided_slice %147 {offsets = [0, 96], sizes = [8, 32], strides = [1, 1]} : vector<8x128xf32> to vector<8x32xf32>
    %155 = math.tanh %154 : vector<8x32xf32>
    %156 = vector.extract_strided_slice %153 {offsets = [0, 0], sizes = [8, 32], strides = [1, 1]} : vector<8x96xf32> to vector<8x32xf32>
    %157 = vector.extract_strided_slice %153 {offsets = [0, 32], sizes = [8, 32], strides = [1, 1]} : vector<8x96xf32> to vector<8x32xf32>
    %158 = vector.extract_strided_slice %153 {offsets = [0, 64], sizes = [8, 32], strides = [1, 1]} : vector<8x96xf32> to vector<8x32xf32>
    %159 = arith.mulf %157, %141 : vector<8x32xf32>
    %160 = arith.mulf %156, %155 : vector<8x32xf32>
    %161 = arith.addf %159, %160 : vector<8x32xf32>
    %162 = math.tanh %161 : vector<8x32xf32>
    %163 = arith.mulf %158, %162 : vector<8x32xf32>
    %c5_i32 = arith.constant 5 : i32
    %164 = vector.broadcast %c5_i32 : i32 to vector<8x1xi32>
    %165 = arith.cmpi sgt, %1, %164 : vector<8x1xi32>
    %166 = vector.shape_cast %165 : vector<8x1xi1> to vector<8x1xi1>
    %167 = vector.broadcast %166 : vector<8x1xi1> to vector<8x32xi1>
    %168 = arith.select %167, %161, %141 : vector<8x32xi1>, vector<8x32xf32>
    %169 = vector.shape_cast %165 : vector<8x1xi1> to vector<8x1xi1>
    %170 = vector.broadcast %169 : vector<8x1xi1> to vector<8x32xi1>
    %171 = arith.select %170, %163, %144 : vector<8x32xi1>, vector<8x32xf32>
    %172 = vector.extract_strided_slice %7 {offsets = [48, 0], sizes = [8, 128], strides = [1, 1]} : vector<64x128xf32> to vector<8x128xf32>
    %cst_23 = arith.constant dense<0.000000e+00> : vector<8x128xf32>
    %173 = tpu.matmul %171, %0, %cst_23 {dimension_numbers = #tpu.dot_dimension_numbers<[1], [0], [0], [1], [0, 0, 1, 1], [], []>} : vector<8x32xf32>, vector<32x128xf32>, vector<8x128xf32> -> vector<8x128xf32>
    %174 = arith.addf %172, %173 : vector<8x128xf32>
    %175 = vector.extract_strided_slice %174 {offsets = [0, 0], sizes = [8, 96], strides = [1, 1]} : vector<8x128xf32> to vector<8x96xf32>
    %176 = arith.negf %175 : vector<8x96xf32>
    %177 = math.exp %176 : vector<8x96xf32>
    %cst_24 = arith.constant 1.000000e+00 : f32
    %178 = vector.broadcast %cst_24 : f32 to vector<8x96xf32>
    %179 = arith.addf %178, %177 : vector<8x96xf32>
    %180 = arith.divf %178, %179 : vector<8x96xf32>
    %181 = vector.extract_strided_slice %174 {offsets = [0, 96], sizes = [8, 32], strides = [1, 1]} : vector<8x128xf32> to vector<8x32xf32>
    %182 = math.tanh %181 : vector<8x32xf32>
    %183 = vector.extract_strided_slice %180 {offsets = [0, 0], sizes = [8, 32], strides = [1, 1]} : vector<8x96xf32> to vector<8x32xf32>
    %184 = vector.extract_strided_slice %180 {offsets = [0, 32], sizes = [8, 32], strides = [1, 1]} : vector<8x96xf32> to vector<8x32xf32>
    %185 = vector.extract_strided_slice %180 {offsets = [0, 64], sizes = [8, 32], strides = [1, 1]} : vector<8x96xf32> to vector<8x32xf32>
    %186 = arith.mulf %184, %168 : vector<8x32xf32>
    %187 = arith.mulf %183, %182 : vector<8x32xf32>
    %188 = arith.addf %186, %187 : vector<8x32xf32>
    %189 = math.tanh %188 : vector<8x32xf32>
    %190 = arith.mulf %185, %189 : vector<8x32xf32>
    %c6_i32 = arith.constant 6 : i32
    %191 = vector.broadcast %c6_i32 : i32 to vector<8x1xi32>
    %192 = arith.cmpi sgt, %1, %191 : vector<8x1xi32>
    %193 = vector.shape_cast %192 : vector<8x1xi1> to vector<8x1xi1>
    %194 = vector.broadcast %193 : vector<8x1xi1> to vector<8x32xi1>
    %195 = arith.select %194, %188, %168 : vector<8x32xi1>, vector<8x32xf32>
    %196 = vector.shape_cast %192 : vector<8x1xi1> to vector<8x1xi1>
    %197 = vector.broadcast %196 : vector<8x1xi1> to vector<8x32xi1>
    %198 = arith.select %197, %190, %171 : vector<8x32xi1>, vector<8x32xf32>
    %199 = vector.extract_strided_slice %7 {offsets = [56, 0], sizes = [8, 128], strides = [1, 1]} : vector<64x128xf32> to vector<8x128xf32>
    %cst_25 = arith.constant dense<0.000000e+00> : vector<8x128xf32>
    %200 = tpu.matmul %198, %0, %cst_25 {dimension_numbers = #tpu.dot_dimension_numbers<[1], [0], [0], [1], [0, 0, 1, 1], [], []>} : vector<8x32xf32>, vector<32x128xf32>, vector<8x128xf32> -> vector<8x128xf32>
    %201 = arith.addf %199, %200 : vector<8x128xf32>
    %202 = vector.extract_strided_slice %201 {offsets = [0, 0], sizes = [8, 96], strides = [1, 1]} : vector<8x128xf32> to vector<8x96xf32>
    %203 = arith.negf %202 : vector<8x96xf32>
    %204 = math.exp %203 : vector<8x96xf32>
    %cst_26 = arith.constant 1.000000e+00 : f32
    %205 = vector.broadcast %cst_26 : f32 to vector<8x96xf32>
    %206 = arith.addf %205, %204 : vector<8x96xf32>
    %207 = arith.divf %205, %206 : vector<8x96xf32>
    %208 = vector.extract_strided_slice %201 {offsets = [0, 96], sizes = [8, 32], strides = [1, 1]} : vector<8x128xf32> to vector<8x32xf32>
    %209 = math.tanh %208 : vector<8x32xf32>
    %210 = vector.extract_strided_slice %207 {offsets = [0, 0], sizes = [8, 32], strides = [1, 1]} : vector<8x96xf32> to vector<8x32xf32>
    %211 = vector.extract_strided_slice %207 {offsets = [0, 32], sizes = [8, 32], strides = [1, 1]} : vector<8x96xf32> to vector<8x32xf32>
    %212 = vector.extract_strided_slice %207 {offsets = [0, 64], sizes = [8, 32], strides = [1, 1]} : vector<8x96xf32> to vector<8x32xf32>
    %213 = arith.mulf %211, %195 : vector<8x32xf32>
    %214 = arith.mulf %210, %209 : vector<8x32xf32>
    %215 = arith.addf %213, %214 : vector<8x32xf32>
    %216 = math.tanh %215 : vector<8x32xf32>
    %217 = arith.mulf %212, %216 : vector<8x32xf32>
    %c7_i32 = arith.constant 7 : i32
    %218 = vector.broadcast %c7_i32 : i32 to vector<8x1xi32>
    %219 = arith.cmpi sgt, %1, %218 : vector<8x1xi32>
    %220 = vector.shape_cast %219 : vector<8x1xi1> to vector<8x1xi1>
    %221 = vector.broadcast %220 : vector<8x1xi1> to vector<8x32xi1>
    %222 = arith.select %221, %217, %198 : vector<8x32xi1>, vector<8x32xf32>
    %c0_27 = arith.constant 0 : index
    %c0_28 = arith.constant 0 : index
    %223 = vector.load %arg5[%c0_27, %c0_28] : memref<32x8xf32, #tpu.memory_space<vmem>>, vector<32x8xf32>
    %cst_29 = arith.constant dense<0.000000e+00> : vector<8x8xf32>
    %224 = tpu.matmul %222, %223, %cst_29 {dimension_numbers = #tpu.dot_dimension_numbers<[1], [0], [0], [1], [0, 0, 1, 1], [], []>} : vector<8x32xf32>, vector<32x8xf32>, vector<8x8xf32> -> vector<8x8xf32>
    %c0_30 = arith.constant 0 : index
    %c0_31 = arith.constant 0 : index
    %225 = vector.load %arg6[%c0_30, %c0_31] : memref<1x8xf32, #tpu.memory_space<vmem>>, vector<1x8xf32>
    %226 = vector.broadcast %225 : vector<1x8xf32> to vector<8x8xf32>
    %227 = arith.addf %224, %226 : vector<8x8xf32>
    %cst_32 = arith.constant dense<0xFF800000> : vector<8xf32>
    %228 = vector.multi_reduction <maximumf>, %227, %cst_32 [1] : vector<8x8xf32> to vector<8xf32>
    %229 = vector.shape_cast %228 : vector<8xf32> to vector<8x1xf32>
    %230 = vector.broadcast %229 : vector<8x1xf32> to vector<8x8xf32>
    %231 = arith.subf %227, %230 : vector<8x8xf32>
    %232 = math.exp %231 : vector<8x8xf32>
    %cst_33 = arith.constant dense<0.000000e+00> : vector<8xf32>
    %233 = vector.multi_reduction <add>, %232, %cst_33 [1] : vector<8x8xf32> to vector<8xf32>
    %234 = vector.shape_cast %233 : vector<8xf32> to vector<8x1xf32>
    %235 = math.log %234 : vector<8x1xf32>
    %236 = vector.broadcast %235 : vector<8x1xf32> to vector<8x8xf32>
    %237 = arith.subf %231, %236 : vector<8x8xf32>
    %c0_34 = arith.constant 0 : index
    %c0_35 = arith.constant 0 : index
    %238 = vector.load %arg7[%c0_34, %c0_35] : memref<8x8xf32, #tpu.memory_space<vmem>>, vector<8x8xf32>
    tpu.vector_store %arg7[%c0_34, %c0_35], %237 {strides = array<i32>} : memref<8x8xf32, #tpu.memory_space<vmem>>, vector<8x8xf32>,
    return
  }
}

</mosaic_0001>

<llo_original>
// kernel: tpu_custom_call.1
$region0: #{tpu_custom_call.1}
  #allocation0 [shape = 'u32[]', space=smem, size = 0x4, offset = 0x4, fixed_abs, tag = 'smem constant byte address 0x4 - core index']
  #allocation1 [shape = 'u32[144,128]{1,0:T(1,128)}', space=vmem, size = 0x12000, scoped, tag = 'internal scratch']
  %s0 = inlined_call_operand.vmem [shape: f32[64,16], index: 0, kind: input, shape index: {}]
  %s1 = inlined_call_operand.vmem [shape: s32[8,1], index: 1, kind: input, shape index: {}]
  %s2 = inlined_call_operand.vmem [shape: f32[16,128], index: 2, kind: input, shape index: {}]
  %s3 = inlined_call_operand.vmem [shape: f32[32,128], index: 3, kind: input, shape index: {}]
  %s4 = inlined_call_operand.vmem [shape: f32[1,128], index: 4, kind: input, shape index: {}]
  %s5 = inlined_call_operand.vmem [shape: f32[32,8], index: 5, kind: input, shape index: {}]
  %s6 = inlined_call_operand.vmem [shape: f32[1,8], index: 6, kind: input, shape index: {}]
  %s7 = inlined_call_operand.hbm [shape: f32[8,8], index: 7, kind: output, shape index: {}]
  %s8 = sld [smem:[#allocation0]]
  $region38: #{tpu_custom_call.1} parent=0
    _
  %s10 = ssub.s32 1, %s8
  %s11 = scalar_select 0, %s10, %s8
  $region1: #{tpu_custom_call.1} parent=0
    #allocation2 [shape = 'u8[4096]{0}', space=vmem, size = 0x1000, scoped, tag = 'output window, operand 0, single buffered']
    #allocation3 [shape = 's32[1]{0}', space=sflag, size = 0x4, scoped, tag = 'scoped memory for tpu_custom_call.1']
    %12 = vsyncpa [#allocation3], 0
    // Predicated region
    $region2: #{tpu_custom_call.1} parent=1 // pred_check
      _
    $region3: #{tpu_custom_call.1} parent=1 // pred_check_branch
      %14 = sbr.rel (0) target = $region5
    $region4: #{tpu_custom_call.1} parent=1 // pred_region
      _
    $region5: #{tpu_custom_call.1} parent=1 // pred_fallthru
      _
    // Predicated region
    $region6: #{tpu_custom_call.1} parent=1 // pred_check
      _
    $region7: #{tpu_custom_call.1} parent=1 // pred_check_branch
      %16 = sbr.rel (0) target = $region9
    $region8: #{tpu_custom_call.1} parent=1 // pred_region
      _
    $region9: #{tpu_custom_call.1} parent=1 // pred_fallthru
      _
    // Predicated region
    $region10: #{tpu_custom_call.1} parent=1 // pred_check
      _
    $region11: #{tpu_custom_call.1} parent=1 // pred_check_branch
      %18 = sbr.rel (0) target = $region13
    $region12: #{tpu_custom_call.1} parent=1 // pred_region
      _
    $region13: #{tpu_custom_call.1} parent=1 // pred_fallthru
      _
    // Predicated region
    $region14: #{tpu_custom_call.1} parent=1 // pred_check
      _
    $region15: #{tpu_custom_call.1} parent=1 // pred_check_branch
      %20 = sbr.rel (0) target = $region17
    $region16: #{tpu_custom_call.1} parent=1 // pred_region
      _
    $region17: #{tpu_custom_call.1} parent=1 // pred_fallthru
      _
    // Predicated region
    $region18: #{tpu_custom_call.1} parent=1 // pred_check
      _
    $region19: #{tpu_custom_call.1} parent=1 // pred_check_branch
      %22 = sbr.rel (0) target = $region21
    $region20: #{tpu_custom_call.1} parent=1 // pred_region
      _
    $region21: #{tpu_custom_call.1} parent=1 // pred_fallthru
      _
    // Predicated region
    $region22: #{tpu_custom_call.1} parent=1 // pred_check
      _
    $region23: #{tpu_custom_call.1} parent=1 // pred_check_branch
      %24 = sbr.rel (0) target = $region25
    $region24: #{tpu_custom_call.1} parent=1 // pred_region
      _
    $region25: #{tpu_custom_call.1} parent=1 // pred_fallthru
      _
    // Predicated region
    $region26: #{tpu_custom_call.1} parent=1 // pred_check
      _
    $region27: #{tpu_custom_call.1} parent=1 // pred_check_branch
      %26 = sbr.rel (0) target = $region29
    $region28: #{tpu_custom_call.1} parent=1 // pred_region
      _
    $region29: #{tpu_custom_call.1} parent=1 // pred_fallthru
      _
    %v27 = vld [vmem:[%s3] sm:$0xff]
    %v28 = vld [vmem:[%s3 + $0x8] sm:$0xff]
    %v29 = vld [vmem:[%s3 + $0x10] sm:$0xff]
    %v30 = vld [vmem:[%s3 + $0x18] sm:$0xff]
    %v31 = vld [vmem:[%s1] sm:$0xff]
    %v32 = vld [vmem:[%s0] sm:$0xff]
    %v33 = vld [vmem:[%s0 + $0x8] sm:$0xff]
    %v34 = vld [vmem:[%s0 + $0x10] sm:$0xff]
    %v35 = vld [vmem:[%s0 + $0x18] sm:$0xff]
    %v36 = vld [vmem:[%s0 + $0x20] sm:$0xff]
    %v37 = vld [vmem:[%s0 + $0x28] sm:$0xff]
    %v38 = vld [vmem:[%s0 + $0x30] sm:$0xff]
    %v39 = vld [vmem:[%s0 + $0x38] sm:$0xff]
    %v40 = vld [vmem:[%s2] sm:$0xff]
    %v41 = vld [vmem:[%s2 + $0x8] sm:$0xff]
    %v42 = vld [vmem:[%s4] sm:$0x1]
    %v44 = vlaneseq
    %v45 = vshrl.u32 %v44, 7
    %v46 = vsub.s32 0, %v45
    %v47 = vrot.slane %v42, %v46
    %vm49 = vcmask 130048
    %v51 = vsel %vm49, %v32, 0
    %v54 = vsel %vm49, %v33, 0
    %v57 = vsel %vm49, %v34, 0
    %v60 = vsel %vm49, %v35, 0
    %v63 = vsel %vm49, %v36, 0
    %v66 = vsel %vm49, %v37, 0
    %v69 = vsel %vm49, %v38, 0
    %v72 = vsel %vm49, %v39, 0
    %74 = vmatprep.subr.mxu0 0.0
    %75 = vmatpush1.msra.mxu0 %v40
    %76 = vmatprep.subr.mxu0 0.0
    %77 = vmatpush1.msra.mxu0 %v41
    %78 = vmatprep.subr.mxu0 0.0
    %79 = vmatpush1.msra.mxu0 0.0
    %80 = vmatprep.subr.mxu0 0.0
    %81 = vmatpush1.msra.mxu0 0.0
    %82 = vmatprep.subr.mxu0 0.0
    %83 = vmatpush1.msra.mxu0 0.0
    %84 = vmatprep.subr.mxu0 0.0
    %85 = vmatpush1.msra.mxu0 0.0
    %86 = vmatprep.subr.mxu0 0.0
    %87 = vmatpush1.msra.mxu0 0.0
    %88 = vmatprep.subr.mxu0 0.0
    %89 = vmatpush1.msra.mxu0 0.0
    %90 = vmatprep.subr.mxu0 0.0
    %91 = vmatpush1.msra.mxu0 0.0
    %92 = vmatprep.subr.mxu0 0.0
    %93 = vmatpush1.msra.mxu0 0.0
    %94 = vmatprep.subr.mxu0 0.0
    %95 = vmatpush1.msra.mxu0 0.0
    %96 = vmatprep.subr.mxu0 0.0
    %97 = vmatpush1.msra.mxu0 0.0
    %98 = vmatprep.subr.mxu0 0.0
    %99 = vmatpush1.msra.mxu0 0.0
    %100 = vmatprep.subr.mxu0 0.0
    %101 = vmatpush1.msra.mxu0 0.0
    %102 = vmatprep.subr.mxu0 0.0
    %103 = vmatpush1.msra.mxu0 0.0
    %104 = vmatprep.subr.mxu0 0.0
    %105 = vmatpush1.msra.mxu0 0.0
    %106 = vmatprep.subr.mxu0 0.0
    %107 = vmatpush1.msra.mxu0 0.0
    %108 = vmatprep.subr.mxu0 0.0
    %109 = vmatpush1.msra.mxu0 0.0
    %110 = vmatprep.subr.mxu0 0.0
    %111 = vmatpush1.msra.mxu0 0.0
    %112 = vmatprep.subr.mxu0 0.0
    %113 = vmatpush1.msra.mxu0 0.0
    %114 = vmatprep.subr.mxu0 0.0
    %115 = vmatpush1.msra.mxu0 0.0
    %116 = vmatprep.subr.mxu0 0.0
    %117 = vmatpush1.msra.mxu0 0.0
    %118 = vmatprep.subr.mxu0 0.0
    %119 = vmatpush1.msra.mxu0 0.0
    %120 = vmatprep.subr.mxu0 0.0
    %121 = vmatpush1.msra.mxu0 0.0
    %122 = vmatprep.subr.mxu0 0.0
    %123 = vmatpush1.msra.mxu0 0.0
    %124 = vmatprep.subr.mxu0 0.0
    %125 = vmatpush1.msra.mxu0 0.0
    %126 = vmatprep.subr.mxu0 0.0
    %127 = vmatpush1.msra.mxu0 0.0
    %128 = vmatprep.subr.mxu0 0.0
    %129 = vmatpush1.msra.mxu0 0.0
    %130 = vmatprep.subr.mxu0 0.0
    %131 = vmatpush1.msra.mxu0 0.0
    %132 = vmatprep.subr.mxu0 0.0
    %133 = vmatpush1.msra.mxu0 0.0
    %134 = vmatprep.subr.mxu0 0.0
    %135 = vmatpush1.msra.mxu0 0.0
    %136 = vmatprep.subr.mxu0 0.0
    %137 = vmatpush1.msra.mxu0 0.0
    %138 = vmatprep.mubr.f32.mxu0 0.0
    %139 = vmatmul.mubr.f32.gmra.mrb[0].mxu0 %v51
    %v140 = vpop.f32.mrb[0].mxu0
    %v141 = vadd.f32 %v47, %v140
    %v142 = vpop.f32.mrb[0].mxu0
    %143 = vmatprep.mubr.f32.mxu0 0.0
    %144 = vmatmul.mubr.f32.gmra.mrb[0].mxu0 %v54
    %v145 = vpop.f32.mrb[0].mxu0
    %v146 = vadd.f32 %v47, %v145
    %v147 = vpop.f32.mrb[0].mxu0
    %148 = vmatprep.mubr.f32.mxu0 0.0
    %149 = vmatmul.mubr.f32.gmra.mrb[0].mxu0 %v57
    %v150 = vpop.f32.mrb[0].mxu0
    %v151 = vadd.f32 %v47, %v150
    %v152 = vpop.f32.mrb[0].mxu0
    %153 = vmatprep.mubr.f32.mxu0 0.0
    %154 = vmatmul.mubr.f32.gmra.mrb[0].mxu0 %v60
    %v155 = vpop.f32.mrb[0].mxu0
    %v156 = vadd.f32 %v47, %v155
    %v157 = vpop.f32.mrb[0].mxu0
    %158 = vmatprep.mubr.f32.mxu0 0.0
    %159 = vmatmul.mubr.f32.gmra.mrb[0].mxu0 %v63
    %v160 = vpop.f32.mrb[0].mxu0
    %v161 = vadd.f32 %v47, %v160
    %v162 = vpop.f32.mrb[0].mxu0
    %163 = vmatprep.mubr.f32.mxu0 0.0
    %164 = vmatmul.mubr.f32.gmra.mrb[0].mxu0 %v66
    %v165 = vpop.f32.mrb[0].mxu0
    %v166 = vadd.f32 %v47, %v165
    %v167 = vpop.f32.mrb[0].mxu0
    %168 = vmatprep.mubr.f32.mxu0 0.0
    %169 = vmatmul.mubr.f32.gmra.mrb[0].mxu0 %v69
    %v170 = vpop.f32.mrb[0].mxu0
    %v171 = vadd.f32 %v47, %v170
    %v172 = vpop.f32.mrb[0].mxu0
    %173 = vmatprep.mubr.f32.mxu0 0.0
    %174 = vmatmul.mubr.f32.gmra.mrb[0].mxu0 %v72
    %v175 = vpop.f32.mrb[0].mxu0
    %v176 = vadd.f32 %v47, %v175
    %v177 = vpop.f32.mrb[0].mxu0
    %178 = vdwg.mxu0
    %vm179 = vcmask 261120
    %v181 = vsel %vm179, 0.0, 0
    %183 = vmatprep.subr.mxu0 0.0
    %184 = vmatpush1.msra.mxu0 %v27
    %185 = vmatprep.subr.mxu0 0.0
    %186 = vmatpush1.msra.mxu0 %v28
    %187 = vmatprep.subr.mxu0 0.0
    %188 = vmatpush1.msra.mxu0 %v29
    %189 = vmatprep.subr.mxu0 0.0
    %190 = vmatpush1.msra.mxu0 %v30
    %191 = vmatprep.subr.mxu0 0.0
    %192 = vmatpush1.msra.mxu0 0.0
    %193 = vmatprep.subr.mxu0 0.0
    %194 = vmatpush1.msra.mxu0 0.0
    %195 = vmatprep.subr.mxu0 0.0
    %196 = vmatpush1.msra.mxu0 0.0
    %197 = vmatprep.subr.mxu0 0.0
    %198 = vmatpush1.msra.mxu0 0.0
    %199 = vmatprep.subr.mxu0 0.0
    %200 = vmatpush1.msra.mxu0 0.0
    %201 = vmatprep.subr.mxu0 0.0
    %202 = vmatpush1.msra.mxu0 0.0
    %203 = vmatprep.subr.mxu0 0.0
    %204 = vmatpush1.msra.mxu0 0.0
    %205 = vmatprep.subr.mxu0 0.0
    %206 = vmatpush1.msra.mxu0 0.0
    %207 = vmatprep.subr.mxu0 0.0
    %208 = vmatpush1.msra.mxu0 0.0
    %209 = vmatprep.subr.mxu0 0.0
    %210 = vmatpush1.msra.mxu0 0.0
    %211 = vmatprep.subr.mxu0 0.0
    %212 = vmatpush1.msra.mxu0 0.0
    %213 = vmatprep.subr.mxu0 0.0
    %214 = vmatpush1.msra.mxu0 0.0
    %215 = vmatprep.subr.mxu0 0.0
    %216 = vmatpush1.msra.mxu0 0.0
    %217 = vmatprep.subr.mxu0 0.0
    %218 = vmatpush1.msra.mxu0 0.0
    %219 = vmatprep.subr.mxu0 0.0
    %220 = vmatpush1.msra.mxu0 0.0
    %221 = vmatprep.subr.mxu0 0.0
    %222 = vmatpush1.msra.mxu0 0.0
    %223 = vmatprep.subr.mxu0 0.0
    %224 = vmatpush1.msra.mxu0 0.0
    %225 = vmatprep.subr.mxu0 0.0
    %226 = vmatpush1.msra.mxu0 0.0
    %227 = vmatprep.subr.mxu0 0.0
    %228 = vmatpush1.msra.mxu0 0.0
    %229 = vmatprep.subr.mxu0 0.0
    %230 = vmatpush1.msra.mxu0 0.0
    %231 = vmatprep.subr.mxu0 0.0
    %232 = vmatpush1.msra.mxu0 0.0
    %233 = vmatprep.subr.mxu0 0.0
    %234 = vmatpush1.msra.mxu0 0.0
    %235 = vmatprep.subr.mxu0 0.0
    %236 = vmatpush1.msra.mxu0 0.0
    %237 = vmatprep.subr.mxu0 0.0
    %238 = vmatpush1.msra.mxu0 0.0
    %239 = vmatprep.subr.mxu0 0.0
    %240 = vmatpush1.msra.mxu0 0.0
    %241 = vmatprep.subr.mxu0 0.0
    %242 = vmatpush1.msra.mxu0 0.0
    %243 = vmatprep.subr.mxu0 0.0
    %244 = vmatpush1.msra.mxu0 0.0
    %245 = vmatprep.subr.mxu0 0.0
    %246 = vmatpush1.msra.mxu0 0.0
    %247 = vmatprep.mubr.f32.mxu0 0.0
    %248 = vmatmul.mubr.f32.gmra.mrb[0].mxu0 %v181
    %v249 = vpop.f32.mrb[0].mxu0
    %v250 = vadd.f32 0.0, %v249
    %v251 = vpop.f32.mrb[0].mxu0
    %252 = vdwg.mxu0
    %v253 = vadd.f32 %v141, %v250
    %v254 = vxor.u32 %v253, 2147483648
    %v255 = vmul.f32 %v254, 1.442695
    %v256 = vpow.pop %v255
    %v257 = vadd.f32 %v256, 1.0
    %v258 = vrcp.pop %v257
    %v259 = vmul.f32 1.0, %v258
    %v260 = vtanh.pop %v253
    %v261 = vmul.f32 %v259, 0.0
    %263 = vrot.lane.b32.xlu0 %v260, 32
    %v264 = vpop.permute.xlu0 %263
    %v266 = vmul.f32 %v259, %v264
    %268 = vrot.lane.b32.xlu0 %v266, 32
    %v269 = vpop.permute.xlu0 %268
    %v271 = vadd.f32 %v261, %v269
    %v272 = vtanh.pop %v271
    %274 = vrot.lane.b32.xlu0 %v272, 32
    %v275 = vpop.permute.xlu0 %274
    %v277 = vmul.f32 %v259, %v275
    %vm278 = vcmp.gt.s32.totalorder %v31, 0
    %v279 = vsel %vm278, 1, 0
    %280 = vset.pattern.permute.xlu0 0
    %281 = vperm.xlu0 %280, %v279
    %v282 = vpop.permute.xlu0 %281
    %vm283 = vcmp.eq.s32.totalorder %v282, 1
    %v284 = vsel %vm283, %v271, 0.0
    %v285 = vsel %vm283, %v277, 0.0
    %287 = vrot.lane.b32.xlu0 %v285, 64
    %v288 = vpop.permute.xlu0 %287
    %v289 = vsel %vm179, %v288, 0
    %291 = vmatprep.subr.mxu0 0.0
    %292 = vmatpush1.msra.mxu0 %v27
    %293 = vmatprep.subr.mxu0 0.0
    %294 = vmatpush1.msra.mxu0 %v28
    %295 = vmatprep.subr.mxu0 0.0
    %296 = vmatpush1.msra.mxu0 %v29
    %297 = vmatprep.subr.mxu0 0.0
    %298 = vmatpush1.msra.mxu0 %v30
    %299 = vmatprep.subr.mxu0 0.0
    %300 = vmatpush1.msra.mxu0 0.0
    %301 = vmatprep.subr.mxu0 0.0
    %302 = vmatpush1.msra.mxu0 0.0
    %303 = vmatprep.subr.mxu0 0.0
    %304 = vmatpush1.msra.mxu0 0.0
    %305 = vmatprep.subr.mxu0 0.0
    %306 = vmatpush1.msra.mxu0 0.0
    %307 = vmatprep.subr.mxu0 0.0
    %308 = vmatpush1.msra.mxu0 0.0
    %309 = vmatprep.subr.mxu0 0.0
    %310 = vmatpush1.msra.mxu0 0.0
    %311 = vmatprep.subr.mxu0 0.0
    %312 = vmatpush1.msra.mxu0 0.0
    %313 = vmatprep.subr.mxu0 0.0
    %314 = vmatpush1.msra.mxu0 0.0
    %315 = vmatprep.subr.mxu0 0.0
    %316 = vmatpush1.msra.mxu0 0.0
    %317 = vmatprep.subr.mxu0 0.0
    %318 = vmatpush1.msra.mxu0 0.0
    %319 = vmatprep.subr.mxu0 0.0
    %320 = vmatpush1.msra.mxu0 0.0
    %321 = vmatprep.subr.mxu0 0.0
    %322 = vmatpush1.msra.mxu0 0.0
    %323 = vmatprep.subr.mxu0 0.0
    %324 = vmatpush1.msra.mxu0 0.0
    %325 = vmatprep.subr.mxu0 0.0
    %326 = vmatpush1.msra.mxu0 0.0
    %327 = vmatprep.subr.mxu0 0.0
    %328 = vmatpush1.msra.mxu0 0.0
    %329 = vmatprep.subr.mxu0 0.0
    %330 = vmatpush1.msra.mxu0 0.0
    %331 = vmatprep.subr.mxu0 0.0
    %332 = vmatpush1.msra.mxu0 0.0
    %333 = vmatprep.subr.mxu0 0.0
    %334 = vmatpush1.msra.mxu0 0.0
    %335 = vmatprep.subr.mxu0 0.0
    %336 = vmatpush1.msra.mxu0 0.0
    %337 = vmatprep.subr.mxu0 0.0
    %338 = vmatpush1.msra.mxu0 0.0
    %339 = vmatprep.subr.mxu0 0.0
    %340 = vmatpush1.msra.mxu0 0.0
    %341 = vmatprep.subr.mxu0 0.0
    %342 = vmatpush1.msra.mxu0 0.0
    %343 = vmatprep.subr.mxu0 0.0
    %344 = vmatpush1.msra.mxu0 0.0
    %345 = vmatprep.subr.mxu0 0.0
    %346 = vmatpush1.msra.mxu0 0.0
    %347 = vmatprep.subr.mxu0 0.0
    %348 = vmatpush1.msra.mxu0 0.0
    %349 = vmatprep.subr.mxu0 0.0
    %350 = vmatpush1.msra.mxu0 0.0
    %351 = vmatprep.subr.mxu0 0.0
    %352 = vmatpush1.msra.mxu0 0.0
    %353 = vmatprep.subr.mxu0 0.0
    %354 = vmatpush1.msra.mxu0 0.0
    %355 = vmatprep.mubr.f32.mxu0 0.0
    %356 = vmatmul.mubr.f32.gmra.mrb[0].mxu0 %v289
    %v357 = vpop.f32.mrb[0].mxu0
    %v358 = vadd.f32 0.0, %v357
    %v359 = vpop.f32.mrb[0].mxu0
    %360 = vdwg.mxu0
    %v361 = vadd.f32 %v146, %v358
    %v362 = vxor.u32 %v361, 2147483648
    %v363 = vmul.f32 %v362, 1.442695
    %v364 = vpow.pop %v363
    %v365 = vadd.f32 %v364, 1.0
    %v366 = vrcp.pop %v365
    %v367 = vmul.f32 1.0, %v366
    %v368 = vtanh.pop %v361
    %v369 = vmul.f32 %v367, %v284
    %371 = vrot.lane.b32.xlu0 %v368, 32
    %v372 = vpop.permute.xlu0 %371
    %v374 = vmul.f32 %v367, %v372
    %376 = vrot.lane.b32.xlu0 %v374, 32
    %v377 = vpop.permute.xlu0 %376
    %v379 = vadd.f32 %v369, %v377
    %v380 = vtanh.pop %v379
    %382 = vrot.lane.b32.xlu0 %v380, 32
    %v383 = vpop.permute.xlu0 %382
    %v385 = vmul.f32 %v367, %v383
    %vm386 = vcmp.gt.s32.totalorder %v31, 1
    %v387 = vsel %vm386, 1, 0
    %388 = vset.pattern.permute.xlu0 0
    %389 = vperm.xlu0 %388, %v387
    %v390 = vpop.permute.xlu0 %389
    %vm391 = vcmp.eq.s32.totalorder %v390, 1
    %v392 = vsel %vm391, %v379, %v284
    %v393 = vsel %vm391, %v385, %v285
    %395 = vrot.lane.b32.xlu0 %v393, 64
    %v396 = vpop.permute.xlu0 %395
    %v397 = vsel %vm179, %v396, 0
    %399 = vmatprep.subr.mxu0 0.0
    %400 = vmatpush1.msra.mxu0 %v27
    %401 = vmatprep.subr.mxu0 0.0
    %402 = vmatpush1.msra.mxu0 %v28
    %403 = vmatprep.subr.mxu0 0.0
    %404 = vmatpush1.msra.mxu0 %v29
    %405 = vmatprep.subr.mxu0 0.0
    %406 = vmatpush1.msra.mxu0 %v30
    %407 = vmatprep.subr.mxu0 0.0
    %408 = vmatpush1.msra.mxu0 0.0
    %409 = vmatprep.subr.mxu0 0.0
    %410 = vmatpush1.msra.mxu0 0.0
    %411 = vmatprep.subr.mxu0 0.0
    %412 = vmatpush1.msra.mxu0 0.0
    %413 = vmatprep.subr.mxu0 0.0
    %414 = vmatpush1.msra.mxu0 0.0
    %415 = vmatprep.subr.mxu0 0.0
    %416 = vmatpush1.msra.mxu0 0.0
    %417 = vmatprep.subr.mxu0 0.0
    %418 = vmatpush1.msra.mxu0 0.0
    %419 = vmatprep.subr.mxu0 0.0
    %420 = vmatpush1.msra.mxu0 0.0
    %421 = vmatprep.subr.mxu0 0.0
    %422 = vmatpush1.msra.mxu0 0.0
    %423 = vmatprep.subr.mxu0 0.0
    %424 = vmatpush1.msra.mxu0 0.0
    %425 = vmatprep.subr.mxu0 0.0
    %426 = vmatpush1.msra.mxu0 0.0
    %427 = vmatprep.subr.mxu0 0.0
    %428 = vmatpush1.msra.mxu0 0.0
    %429 = vmatprep.subr.mxu0 0.0
    %430 = vmatpush1.msra.mxu0 0.0
    %431 = vmatprep.subr.mxu0 0.0
    %432 = vmatpush1.msra.mxu0 0.0
    %433 = vmatprep.subr.mxu0 0.0
    %434 = vmatpush1.msra.mxu0 0.0
    %435 = vmatprep.subr.mxu0 0.0
    %436 = vmatpush1.msra.mxu0 0.0
    %437 = vmatprep.subr.mxu0 0.0
    %438 = vmatpush1.msra.mxu0 0.0
    %439 = vmatprep.subr.mxu0 0.0
    %440 = vmatpush1.msra.mxu0 0.0
    %441 = vmatprep.subr.mxu0 0.0
    %442 = vmatpush1.msra.mxu0 0.0
    %443 = vmatprep.subr.mxu0 0.0
    %444 = vmatpush1.msra.mxu0 0.0
    %445 = vmatprep.subr.mxu0 0.0
    %446 = vmatpush1.msra.mxu0 0.0
    %447 = vmatprep.subr.mxu0 0.0
    %448 = vmatpush1.msra.mxu0 0.0
    %449 = vmatprep.subr.mxu0 0.0
    %450 = vmatpush1.msra.mxu0 0.0
    %451 = vmatprep.subr.mxu0 0.0
    %452 = vmatpush1.msra.mxu0 0.0
    %453 = vmatprep.subr.mxu0 0.0
    %454 = vmatpush1.msra.mxu0 0.0
    %455 = vmatprep.subr.mxu0 0.0
    %456 = vmatpush1.msra.mxu0 0.0
    %457 = vmatprep.subr.mxu0 0.0
    %458 = vmatpush1.msra.mxu0 0.0
    %459 = vmatprep.subr.mxu0 0.0
    %460 = vmatpush1.msra.mxu0 0.0
    %461 = vmatprep.subr.mxu0 0.0
    %462 = vmatpush1.msra.mxu0 0.0
    %463 = vmatprep.mubr.f32.mxu0 0.0
    %464 = vmatmul.mubr.f32.gmra.mrb[0].mxu0 %v397
    %v465 = vpop.f32.mrb[0].mxu0
    %v466 = vadd.f32 0.0, %v465
    %v467 = vpop.f32.mrb[0].mxu0
    %468 = vdwg.mxu0
    %v469 = vadd.f32 %v151, %v466
    %v470 = vxor.u32 %v469, 2147483648
    %v471 = vmul.f32 %v470, 1.442695
    %v472 = vpow.pop %v471
    %v473 = vadd.f32 %v472, 1.0
    %v474 = vrcp.pop %v473
    %v475 = vmul.f32 1.0, %v474
    %v476 = vtanh.pop %v469
    %v477 = vmul.f32 %v475, %v392
    %479 = vrot.lane.b32.xlu0 %v476, 32
    %v480 = vpop.permute.xlu0 %479
    %v482 = vmul.f32 %v475, %v480
    %484 = vrot.lane.b32.xlu0 %v482, 32
    %v485 = vpop.permute.xlu0 %484
    %v487 = vadd.f32 %v477, %v485
    %v488 = vtanh.pop %v487
    %490 = vrot.lane.b32.xlu0 %v488, 32
    %v491 = vpop.permute.xlu0 %490
    %v493 = vmul.f32 %v475, %v491
    %vm494 = vcmp.gt.s32.totalorder %v31, 2
    %v495 = vsel %vm494, 1, 0
    %496 = vset.pattern.permute.xlu0 0
    %497 = vperm.xlu0 %496, %v495
    %v498 = vpop.permute.xlu0 %497
    %vm499 = vcmp.eq.s32.totalorder %v498, 1
    %v500 = vsel %vm499, %v487, %v392
    %v501 = vsel %vm499, %v493, %v393
    %503 = vrot.lane.b32.xlu0 %v501, 64
    %v504 = vpop.permute.xlu0 %503
    %v505 = vsel %vm179, %v504, 0
    %507 = vmatprep.subr.mxu0 0.0
    %508 = vmatpush1.msra.mxu0 %v27
    %509 = vmatprep.subr.mxu0 0.0
    %510 = vmatpush1.msra.mxu0 %v28
    %511 = vmatprep.subr.mxu0 0.0
    %512 = vmatpush1.msra.mxu0 %v29
    %513 = vmatprep.subr.mxu0 0.0
    %514 = vmatpush1.msra.mxu0 %v30
    %515 = vmatprep.subr.mxu0 0.0
    %516 = vmatpush1.msra.mxu0 0.0
    %517 = vmatprep.subr.mxu0 0.0
    %518 = vmatpush1.msra.mxu0 0.0
    %519 = vmatprep.subr.mxu0 0.0
    %520 = vmatpush1.msra.mxu0 0.0
    %521 = vmatprep.subr.mxu0 0.0
    %522 = vmatpush1.msra.mxu0 0.0
    %523 = vmatprep.subr.mxu0 0.0
    %524 = vmatpush1.msra.mxu0 0.0
    %525 = vmatprep.subr.mxu0 0.0
    %526 = vmatpush1.msra.mxu0 0.0
    %527 = vmatprep.subr.mxu0 0.0
    %528 = vmatpush1.msra.mxu0 0.0
    %529 = vmatprep.subr.mxu0 0.0
    %530 = vmatpush1.msra.mxu0 0.0
    %531 = vmatprep.subr.mxu0 0.0
    %532 = vmatpush1.msra.mxu0 0.0
    %533 = vmatprep.subr.mxu0 0.0
    %534 = vmatpush1.msra.mxu0 0.0
    %535 = vmatprep.subr.mxu0 0.0
    %536 = vmatpush1.msra.mxu0 0.0
    %537 = vmatprep.subr.mxu0 0.0
    %538 = vmatpush1.msra.mxu0 0.0
    %539 = vmatprep.subr.mxu0 0.0
    %540 = vmatpush1.msra.mxu0 0.0
    %541 = vmatprep.subr.mxu0 0.0
    %542 = vmatpush1.msra.mxu0 0.0
    %543 = vmatprep.subr.mxu0 0.0
    %544 = vmatpush1.msra.mxu0 0.0
    %545 = vmatprep.subr.mxu0 0.0
    %546 = vmatpush1.msra.mxu0 0.0
    %547 = vmatprep.subr.mxu0 0.0
    %548 = vmatpush1.msra.mxu0 0.0
    %549 = vmatprep.subr.mxu0 0.0
    %550 = vmatpush1.msra.mxu0 0.0
    %551 = vmatprep.subr.mxu0 0.0
    %552 = vmatpush1.msra.mxu0 0.0
    %553 = vmatprep.subr.mxu0 0.0
    %554 = vmatpush1.msra.mxu0 0.0
    %555 = vmatprep.subr.mxu0 0.0
    %556 = vmatpush1.msra.mxu0 0.0
    %557 = vmatprep.subr.mxu0 0.0
    %558 = vmatpush1.msra.mxu0 0.0
    %559 = vmatprep.subr.mxu0 0.0
    %560 = vmatpush1.msra.mxu0 0.0
    %561 = vmatprep.subr.mxu0 0.0
    %562 = vmatpush1.msra.mxu0 0.0
    %563 = vmatprep.subr.mxu0 0.0
    %564 = vmatpush1.msra.mxu0 0.0
    %565 = vmatprep.subr.mxu0 0.0
    %566 = vmatpush1.msra.mxu0 0.0
    %567 = vmatprep.subr.mxu0 0.0
    %568 = vmatpush1.msra.mxu0 0.0
    %569 = vmatprep.subr.mxu0 0.0
    %570 = vmatpush1.msra.mxu0 0.0
    %571 = vmatprep.mubr.f32.mxu0 0.0
    %572 = vmatmul.mubr.f32.gmra.mrb[0].mxu0 %v505
    %v573 = vpop.f32.mrb[0].mxu0
    %v574 = vadd.f32 0.0, %v573
    %v575 = vpop.f32.mrb[0].mxu0
    %576 = vdwg.mxu0
    %v577 = vadd.f32 %v156, %v574
    %v578 = vxor.u32 %v577, 2147483648
    %v579 = vmul.f32 %v578, 1.442695
    %v580 = vpow.pop %v579
    %v581 = vadd.f32 %v580, 1.0
    %v582 = vrcp.pop %v581
    %v583 = vmul.f32 1.0, %v582
    %v584 = vtanh.pop %v577
    %v585 = vmul.f32 %v583, %v500
    %587 = vrot.lane.b32.xlu0 %v584, 32
    %v588 = vpop.permute.xlu0 %587
    %v590 = vmul.f32 %v583, %v588
    %592 = vrot.lane.b32.xlu0 %v590, 32
    %v593 = vpop.permute.xlu0 %592
    %v595 = vadd.f32 %v585, %v593
    %v596 = vtanh.pop %v595
    %598 = vrot.lane.b32.xlu0 %v596, 32
    %v599 = vpop.permute.xlu0 %598
    %v601 = vmul.f32 %v583, %v599
    %vm602 = vcmp.gt.s32.totalorder %v31, 3
    %v603 = vsel %vm602, 1, 0
    %604 = vset.pattern.permute.xlu0 0
    %605 = vperm.xlu0 %604, %v603
    %v606 = vpop.permute.xlu0 %605
    %vm607 = vcmp.eq.s32.totalorder %v606, 1
    %v608 = vsel %vm607, %v595, %v500
    %v609 = vsel %vm607, %v601, %v501
    %611 = vrot.lane.b32.xlu0 %v609, 64
    %v612 = vpop.permute.xlu0 %611
    %v613 = vsel %vm179, %v612, 0
    %615 = vmatprep.subr.mxu0 0.0
    %616 = vmatpush1.msra.mxu0 %v27
    %617 = vmatprep.subr.mxu0 0.0
    %618 = vmatpush1.msra.mxu0 %v28
    %619 = vmatprep.subr.mxu0 0.0
    %620 = vmatpush1.msra.mxu0 %v29
    %621 = vmatprep.subr.mxu0 0.0
    %622 = vmatpush1.msra.mxu0 %v30
    %623 = vmatprep.subr.mxu0 0.0
    %624 = vmatpush1.msra.mxu0 0.0
    %625 = vmatprep.subr.mxu0 0.0
    %626 = vmatpush1.msra.mxu0 0.0
    %627 = vmatprep.subr.mxu0 0.0
    %628 = vmatpush1.msra.mxu0 0.0
    %629 = vmatprep.subr.mxu0 0.0
    %630 = vmatpush1.msra.mxu0 0.0
    %631 = vmatprep.subr.mxu0 0.0
    %632 = vmatpush1.msra.mxu0 0.0
    %633 = vmatprep.subr.mxu0 0.0
    %634 = vmatpush1.msra.mxu0 0.0
    %635 = vmatprep.subr.mxu0 0.0
    %636 = vmatpush1.msra.mxu0 0.0
    %637 = vmatprep.subr.mxu0 0.0
    %638 = vmatpush1.msra.mxu0 0.0
    %639 = vmatprep.subr.mxu0 0.0
    %640 = vmatpush1.msra.mxu0 0.0
    %641 = vmatprep.subr.mxu0 0.0
    %642 = vmatpush1.msra.mxu0 0.0
    %643 = vmatprep.subr.mxu0 0.0
    %644 = vmatpush1.msra.mxu0 0.0
    %645 = vmatprep.subr.mxu0 0.0
    %646 = vmatpush1.msra.mxu0 0.0
    %647 = vmatprep.subr.mxu0 0.0
    %648 = vmatpush1.msra.mxu0 0.0
    %649 = vmatprep.subr.mxu0 0.0
    %650 = vmatpush1.msra.mxu0 0.0
    %651 = vmatprep.subr.mxu0 0.0
    %652 = vmatpush1.msra.mxu0 0.0
    %653 = vmatprep.subr.mxu0 0.0
    %654 = vmatpush1.msra.mxu0 0.0
    %655 = vmatprep.subr.mxu0 0.0
    %656 = vmatpush1.msra.mxu0 0.0
    %657 = vmatprep.subr.mxu0 0.0
    %658 = vmatpush1.msra.mxu0 0.0
    %659 = vmatprep.subr.mxu0 0.0
    %660 = vmatpush1.msra.mxu0 0.0
    %661 = vmatprep.subr.mxu0 0.0
    %662 = vmatpush1.msra.mxu0 0.0
    %663 = vmatprep.subr.mxu0 0.0
    %664 = vmatpush1.msra.mxu0 0.0
    %665 = vmatprep.subr.mxu0 0.0
    %666 = vmatpush1.msra.mxu0 0.0
    %667 = vmatprep.subr.mxu0 0.0
    %668 = vmatpush1.msra.mxu0 0.0
    %669 = vmatprep.subr.mxu0 0.0
    %670 = vmatpush1.msra.mxu0 0.0
    %671 = vmatprep.subr.mxu0 0.0
    %672 = vmatpush1.msra.mxu0 0.0
    %673 = vmatprep.subr.mxu0 0.0
    %674 = vmatpush1.msra.mxu0 0.0
    %675 = vmatprep.subr.mxu0 0.0
    %676 = vmatpush1.msra.mxu0 0.0
    %677 = vmatprep.subr.mxu0 0.0
    %678 = vmatpush1.msra.mxu0 0.0
    %679 = vmatprep.mubr.f32.mxu0 0.0
    %680 = vmatmul.mubr.f32.gmra.mrb[0].mxu0 %v613
    %v681 = vpop.f32.mrb[0].mxu0
    %v682 = vadd.f32 0.0, %v681
    %v683 = vpop.f32.mrb[0].mxu0
    %684 = vdwg.mxu0
    %v685 = vadd.f32 %v161, %v682
    %v686 = vxor.u32 %v685, 2147483648
    %v687 = vmul.f32 %v686, 1.442695
    %v688 = vpow.pop %v687
    %v689 = vadd.f32 %v688, 1.0
    %v690 = vrcp.pop %v689
    %v691 = vmul.f32 1.0, %v690
    %v692 = vtanh.pop %v685
    %v693 = vmul.f32 %v691, %v608
    %695 = vrot.lane.b32.xlu0 %v692, 32
    %v696 = vpop.permute.xlu0 %695
    %v698 = vmul.f32 %v691, %v696
    %700 = vrot.lane.b32.xlu0 %v698, 32
    %v701 = vpop.permute.xlu0 %700
    %v703 = vadd.f32 %v693, %v701
    %v704 = vtanh.pop %v703
    %706 = vrot.lane.b32.xlu0 %v704, 32
    %v707 = vpop.permute.xlu0 %706
    %v709 = vmul.f32 %v691, %v707
    %vm710 = vcmp.gt.s32.totalorder %v31, 4
    %v711 = vsel %vm710, 1, 0
    %712 = vset.pattern.permute.xlu0 0
    %713 = vperm.xlu0 %712, %v711
    %v714 = vpop.permute.xlu0 %713
    %vm715 = vcmp.eq.s32.totalorder %v714, 1
    %v716 = vsel %vm715, %v703, %v608
    %v717 = vsel %vm715, %v709, %v609
    %719 = vrot.lane.b32.xlu0 %v717, 64
    %v720 = vpop.permute.xlu0 %719
    %v721 = vsel %vm179, %v720, 0
    %723 = vmatprep.subr.mxu0 0.0
    %724 = vmatpush1.msra.mxu0 %v27
    %725 = vmatprep.subr.mxu0 0.0
    %726 = vmatpush1.msra.mxu0 %v28
    %727 = vmatprep.subr.mxu0 0.0
    %728 = vmatpush1.msra.mxu0 %v29
    %729 = vmatprep.subr.mxu0 0.0
    %730 = vmatpush1.msra.mxu0 %v30
    %731 = vmatprep.subr.mxu0 0.0
    %732 = vmatpush1.msra.mxu0 0.0
    %733 = vmatprep.subr.mxu0 0.0
    %734 = vmatpush1.msra.mxu0 0.0
    %735 = vmatprep.subr.mxu0 0.0
    %736 = vmatpush1.msra.mxu0 0.0
    %737 = vmatprep.subr.mxu0 0.0
    %738 = vmatpush1.msra.mxu0 0.0
    %739 = vmatprep.subr.mxu0 0.0
    %740 = vmatpush1.msra.mxu0 0.0
    %741 = vmatprep.subr.mxu0 0.0
    %742 = vmatpush1.msra.mxu0 0.0
    %743 = vmatprep.subr.mxu0 0.0
    %744 = vmatpush1.msra.mxu0 0.0
    %745 = vmatprep.subr.mxu0 0.0
    %746 = vmatpush1.msra.mxu0 0.0
    %747 = vmatprep.subr.mxu0 0.0
    %748 = vmatpush1.msra.mxu0 0.0
    %749 = vmatprep.subr.mxu0 0.0
    %750 = vmatpush1.msra.mxu0 0.0
    %751 = vmatprep.subr.mxu0 0.0
    %752 = vmatpush1.msra.mxu0 0.0
    %753 = vmatprep.subr.mxu0 0.0
    %754 = vmatpush1.msra.mxu0 0.0
    %755 = vmatprep.subr.mxu0 0.0
    %756 = vmatpush1.msra.mxu0 0.0
    %757 = vmatprep.subr.mxu0 0.0
    %758 = vmatpush1.msra.mxu0 0.0
    %759 = vmatprep.subr.mxu0 0.0
    %760 = vmatpush1.msra.mxu0 0.0
    %761 = vmatprep.subr.mxu0 0.0
    %762 = vmatpush1.msra.mxu0 0.0
    %763 = vmatprep.subr.mxu0 0.0
    %764 = vmatpush1.msra.mxu0 0.0
    %765 = vmatprep.subr.mxu0 0.0
    %766 = vmatpush1.msra.mxu0 0.0
    %767 = vmatprep.subr.mxu0 0.0
    %768 = vmatpush1.msra.mxu0 0.0
    %769 = vmatprep.subr.mxu0 0.0
    %770 = vmatpush1.msra.mxu0 0.0
    %771 = vmatprep.subr.mxu0 0.0
    %772 = vmatpush1.msra.mxu0 0.0
    %773 = vmatprep.subr.mxu0 0.0
    %774 = vmatpush1.msra.mxu0 0.0
    %775 = vmatprep.subr.mxu0 0.0
    %776 = vmatpush1.msra.mxu0 0.0
    %777 = vmatprep.subr.mxu0 0.0
    %778 = vmatpush1.msra.mxu0 0.0
    %779 = vmatprep.subr.mxu0 0.0
    %780 = vmatpush1.msra.mxu0 0.0
    %781 = vmatprep.subr.mxu0 0.0
    %782 = vmatpush1.msra.mxu0 0.0
    %783 = vmatprep.subr.mxu0 0.0
    %784 = vmatpush1.msra.mxu0 0.0
    %785 = vmatprep.subr.mxu0 0.0
    %786 = vmatpush1.msra.mxu0 0.0
    %787 = vmatprep.mubr.f32.mxu0 0.0
    %788 = vmatmul.mubr.f32.gmra.mrb[0].mxu0 %v721
    %v789 = vpop.f32.mrb[0].mxu0
    %v790 = vadd.f32 0.0, %v789
    %v791 = vpop.f32.mrb[0].mxu0
    %792 = vdwg.mxu0
    %v793 = vadd.f32 %v166, %v790
    %v794 = vxor.u32 %v793, 2147483648
    %v795 = vmul.f32 %v794, 1.442695
    %v796 = vpow.pop %v795
    %v797 = vadd.f32 %v796, 1.0
    %v798 = vrcp.pop %v797
    %v799 = vmul.f32 1.0, %v798
    %v800 = vtanh.pop %v793
    %v801 = vmul.f32 %v799, %v716
    %803 = vrot.lane.b32.xlu0 %v800, 32
    %v804 = vpop.permute.xlu0 %803
    %v806 = vmul.f32 %v799, %v804
    %808 = vrot.lane.b32.xlu0 %v806, 32
    %v809 = vpop.permute.xlu0 %808
    %v811 = vadd.f32 %v801, %v809
    %v812 = vtanh.pop %v811
    %814 = vrot.lane.b32.xlu0 %v812, 32
    %v815 = vpop.permute.xlu0 %814
    %v817 = vmul.f32 %v799, %v815
    %vm818 = vcmp.gt.s32.totalorder %v31, 5
    %v819 = vsel %vm818, 1, 0
    %820 = vset.pattern.permute.xlu0 0
    %821 = vperm.xlu0 %820, %v819
    %v822 = vpop.permute.xlu0 %821
    %vm823 = vcmp.eq.s32.totalorder %v822, 1
    %v824 = vsel %vm823, %v811, %v716
    %v825 = vsel %vm823, %v817, %v717
    %827 = vrot.lane.b32.xlu0 %v825, 64
    %v828 = vpop.permute.xlu0 %827
    %v829 = vsel %vm179, %v828, 0
    %831 = vmatprep.subr.mxu0 0.0
    %832 = vmatpush1.msra.mxu0 %v27
    %833 = vmatprep.subr.mxu0 0.0
    %834 = vmatpush1.msra.mxu0 %v28
    %835 = vmatprep.subr.mxu0 0.0
    %836 = vmatpush1.msra.mxu0 %v29
    %837 = vmatprep.subr.mxu0 0.0
    %838 = vmatpush1.msra.mxu0 %v30
    %839 = vmatprep.subr.mxu0 0.0
    %840 = vmatpush1.msra.mxu0 0.0
    %841 = vmatprep.subr.mxu0 0.0
    %842 = vmatpush1.msra.mxu0 0.0
    %843 = vmatprep.subr.mxu0 0.0
    %844 = vmatpush1.msra.mxu0 0.0
    %845 = vmatprep.subr.mxu0 0.0
    %846 = vmatpush1.msra.mxu0 0.0
    %847 = vmatprep.subr.mxu0 0.0
    %848 = vmatpush1.msra.mxu0 0.0
    %849 = vmatprep.subr.mxu0 0.0
    %850 = vmatpush1.msra.mxu0 0.0
    %851 = vmatprep.subr.mxu0 0.0
    %852 = vmatpush1.msra.mxu0 0.0
    %853 = vmatprep.subr.mxu0 0.0
    %854 = vmatpush1.msra.mxu0 0.0
    %855 = vmatprep.subr.mxu0 0.0
    %856 = vmatpush1.msra.mxu0 0.0
    %857 = vmatprep.subr.mxu0 0.0
    %858 = vmatpush1.msra.mxu0 0.0
    %859 = vmatprep.subr.mxu0 0.0
    %860 = vmatpush1.msra.mxu0 0.0
    %861 = vmatprep.subr.mxu0 0.0
    %862 = vmatpush1.msra.mxu0 0.0
    %863 = vmatprep.subr.mxu0 0.0
    %864 = vmatpush1.msra.mxu0 0.0
    %865 = vmatprep.subr.mxu0 0.0
    %866 = vmatpush1.msra.mxu0 0.0
    %867 = vmatprep.subr.mxu0 0.0
    %868 = vmatpush1.msra.mxu0 0.0
    %869 = vmatprep.subr.mxu0 0.0
    %870 = vmatpush1.msra.mxu0 0.0
    %871 = vmatprep.subr.mxu0 0.0
    %872 = vmatpush1.msra.mxu0 0.0
    %873 = vmatprep.subr.mxu0 0.0
    %874 = vmatpush1.msra.mxu0 0.0
    %875 = vmatprep.subr.mxu0 0.0
    %876 = vmatpush1.msra.mxu0 0.0
    %877 = vmatprep.subr.mxu0 0.0
    %878 = vmatpush1.msra.mxu0 0.0
    %879 = vmatprep.subr.mxu0 0.0
    %880 = vmatpush1.msra.mxu0 0.0
    %881 = vmatprep.subr.mxu0 0.0
    %882 = vmatpush1.msra.mxu0 0.0
    %883 = vmatprep.subr.mxu0 0.0
    %884 = vmatpush1.msra.mxu0 0.0
    %885 = vmatprep.subr.mxu0 0.0
    %886 = vmatpush1.msra.mxu0 0.0
    %887 = vmatprep.subr.mxu0 0.0
    %888 = vmatpush1.msra.mxu0 0.0
    %889 = vmatprep.subr.mxu0 0.0
    %890 = vmatpush1.msra.mxu0 0.0
    %891 = vmatprep.subr.mxu0 0.0
    %892 = vmatpush1.msra.mxu0 0.0
    %893 = vmatprep.subr.mxu0 0.0
    %894 = vmatpush1.msra.mxu0 0.0
    %895 = vmatprep.mubr.f32.mxu0 0.0
    %896 = vmatmul.mubr.f32.gmra.mrb[0].mxu0 %v829
    %v897 = vpop.f32.mrb[0].mxu0
    %v898 = vadd.f32 0.0, %v897
    %v899 = vpop.f32.mrb[0].mxu0
    %900 = vdwg.mxu0
    %v901 = vadd.f32 %v171, %v898
    %v902 = vxor.u32 %v901, 2147483648
    %v903 = vmul.f32 %v902, 1.442695
    %v904 = vpow.pop %v903
    %v905 = vadd.f32 %v904, 1.0
    %v906 = vrcp.pop %v905
    %v907 = vmul.f32 1.0, %v906
    %v908 = vtanh.pop %v901
    %v909 = vmul.f32 %v907, %v824
    %911 = vrot.lane.b32.xlu0 %v908, 32
    %v912 = vpop.permute.xlu0 %911
    %v914 = vmul.f32 %v907, %v912
    %916 = vrot.lane.b32.xlu0 %v914, 32
    %v917 = vpop.permute.xlu0 %916
    %v919 = vadd.f32 %v909, %v917
    %v920 = vtanh.pop %v919
    %922 = vrot.lane.b32.xlu0 %v920, 32
    %v923 = vpop.permute.xlu0 %922
    %v925 = vmul.f32 %v907, %v923
    %vm926 = vcmp.gt.s32.totalorder %v31, 6
    %v927 = vsel %vm926, 1, 0
    %928 = vset.pattern.permute.xlu0 0
    %929 = vperm.xlu0 %928, %v927
    %v930 = vpop.permute.xlu0 %929
    %vm931 = vcmp.eq.s32.totalorder %v930, 1
    %v932 = vsel %vm931, %v919, %v824
    %v933 = vsel %vm931, %v925, %v825
    %935 = vrot.lane.b32.xlu0 %v933, 64
    %v936 = vpop.permute.xlu0 %935
    %v937 = vsel %vm179, %v936, 0
    %939 = vmatprep.subr.mxu0 0.0
    %940 = vmatpush1.msra.mxu0 %v27
    %941 = vmatprep.subr.mxu0 0.0
    %942 = vmatpush1.msra.mxu0 %v28
    %943 = vmatprep.subr.mxu0 0.0
    %944 = vmatpush1.msra.mxu0 %v29
    %945 = vmatprep.subr.mxu0 0.0
    %946 = vmatpush1.msra.mxu0 %v30
    %947 = vmatprep.subr.mxu0 0.0
    %948 = vmatpush1.msra.mxu0 0.0
    %949 = vmatprep.subr.mxu0 0.0
    %950 = vmatpush1.msra.mxu0 0.0
    %951 = vmatprep.subr.mxu0 0.0
    %952 = vmatpush1.msra.mxu0 0.0
    %953 = vmatprep.subr.mxu0 0.0
    %954 = vmatpush1.msra.mxu0 0.0
    %955 = vmatprep.subr.mxu0 0.0
    %956 = vmatpush1.msra.mxu0 0.0
    %957 = vmatprep.subr.mxu0 0.0
    %958 = vmatpush1.msra.mxu0 0.0
    %959 = vmatprep.subr.mxu0 0.0
    %960 = vmatpush1.msra.mxu0 0.0
    %961 = vmatprep.subr.mxu0 0.0
    %962 = vmatpush1.msra.mxu0 0.0
    %963 = vmatprep.subr.mxu0 0.0
    %964 = vmatpush1.msra.mxu0 0.0
    %965 = vmatprep.subr.mxu0 0.0
    %966 = vmatpush1.msra.mxu0 0.0
    %967 = vmatprep.subr.mxu0 0.0
    %968 = vmatpush1.msra.mxu0 0.0
    %969 = vmatprep.subr.mxu0 0.0
    %970 = vmatpush1.msra.mxu0 0.0
    %971 = vmatprep.subr.mxu0 0.0
    %972 = vmatpush1.msra.mxu0 0.0
    %973 = vmatprep.subr.mxu0 0.0
    %974 = vmatpush1.msra.mxu0 0.0
    %975 = vmatprep.subr.mxu0 0.0
    %976 = vmatpush1.msra.mxu0 0.0
    %977 = vmatprep.subr.mxu0 0.0
    %978 = vmatpush1.msra.mxu0 0.0
    %979 = vmatprep.subr.mxu0 0.0
    %980 = vmatpush1.msra.mxu0 0.0
    %981 = vmatprep.subr.mxu0 0.0
    %982 = vmatpush1.msra.mxu0 0.0
    %983 = vmatprep.subr.mxu0 0.0
    %984 = vmatpush1.msra.mxu0 0.0
    %985 = vmatprep.subr.mxu0 0.0
    %986 = vmatpush1.msra.mxu0 0.0
    %987 = vmatprep.subr.mxu0 0.0
    %988 = vmatpush1.msra.mxu0 0.0
    %989 = vmatprep.subr.mxu0 0.0
    %990 = vmatpush1.msra.mxu0 0.0
    %991 = vmatprep.subr.mxu0 0.0
    %992 = vmatpush1.msra.mxu0 0.0
    %993 = vmatprep.subr.mxu0 0.0
    %994 = vmatpush1.msra.mxu0 0.0
    %995 = vmatprep.subr.mxu0 0.0
    %996 = vmatpush1.msra.mxu0 0.0
    %997 = vmatprep.subr.mxu0 0.0
    %998 = vmatpush1.msra.mxu0 0.0
    %999 = vmatprep.subr.mxu0 0.0
    %1000 = vmatpush1.msra.mxu0 0.0
    %1001 = vmatprep.subr.mxu0 0.0
    %1002 = vmatpush1.msra.mxu0 0.0
    %1003 = vmatprep.mubr.f32.mxu0 0.0
    %1004 = vmatmul.mubr.f32.gmra.mrb[0].mxu0 %v937
    %v1005 = vpop.f32.mrb[0].mxu0
    %v1006 = vadd.f32 0.0, %v1005
    %v1007 = vpop.f32.mrb[0].mxu0
    %1008 = vdwg.mxu0
    %v1009 = vadd.f32 %v176, %v1006
    %v1010 = vxor.u32 %v1009, 2147483648
    %v1011 = vmul.f32 %v1010, 1.442695
    %v1012 = vpow.pop %v1011
    %v1013 = vadd.f32 %v1012, 1.0
    %v1014 = vrcp.pop %v1013
    %v1015 = vmul.f32 1.0, %v1014
    %v1016 = vtanh.pop %v1009
    %v1017 = vmul.f32 %v1015, %v932
    %1019 = vrot.lane.b32.xlu0 %v1016, 32
    %v1020 = vpop.permute.xlu0 %1019
    %v1022 = vmul.f32 %v1015, %v1020
    %1024 = vrot.lane.b32.xlu0 %v1022, 32
    %v1025 = vpop.permute.xlu0 %1024
    %v1027 = vadd.f32 %v1017, %v1025
    %v1028 = vtanh.pop %v1027
    %1030 = vrot.lane.b32.xlu0 %v1028, 32
    %v1031 = vpop.permute.xlu0 %1030
    %v1033 = vmul.f32 %v1015, %v1031
    %vm1034 = vcmp.gt.s32.totalorder %v31, 7
    %v1035 = vsel %vm1034, 1, 0
    %1036 = vset.pattern.permute.xlu0 0
    %1037 = vperm.xlu0 %1036, %v1035
    %v1038 = vpop.permute.xlu0 %1037
    %vm1039 = vcmp.eq.s32.totalorder %v1038, 1
    %v1040 = vsel %vm1039, %v1033, %v933
    %v1041 = vld [vmem:[%s5] sm:$0xff]
    %v1042 = vld [vmem:[%s5 + $0x8] sm:$0xff]
    %v1043 = vld [vmem:[%s5 + $0x10] sm:$0xff]
    %v1044 = vld [vmem:[%s5 + $0x18] sm:$0xff]
    %v1045 = vld [vmem:[%s6] sm:$0x1]
    %v1047 = vlaneseq
    %v1048 = vshrl.u32 %v1047, 7
    %v1049 = vsub.s32 0, %v1048
    %v1050 = vrot.slane %v1045, %v1049
    %1053 = vrot.lane.b32.xlu0 %v1040, 64
    %v1054 = vpop.permute.xlu0 %1053
    %v1055 = vsel %vm179, %v1054, 0
    %1057 = vmatprep.subr.mxu0 0.0
    %1058 = vmatpush1.msra.mxu0 %v1041
    %1059 = vmatprep.subr.mxu0 0.0
    %1060 = vmatpush1.msra.mxu0 %v1042
    %1061 = vmatprep.subr.mxu0 0.0
    %1062 = vmatpush1.msra.mxu0 %v1043
    %1063 = vmatprep.subr.mxu0 0.0
    %1064 = vmatpush1.msra.mxu0 %v1044
    %1065 = vmatprep.subr.mxu0 0.0
    %1066 = vmatpush1.msra.mxu0 0.0
    %1067 = vmatprep.subr.mxu0 0.0
    %1068 = vmatpush1.msra.mxu0 0.0
    %1069 = vmatprep.subr.mxu0 0.0
    %1070 = vmatpush1.msra.mxu0 0.0
    %1071 = vmatprep.subr.mxu0 0.0
    %1072 = vmatpush1.msra.mxu0 0.0
    %1073 = vmatprep.subr.mxu0 0.0
    %1074 = vmatpush1.msra.mxu0 0.0
    %1075 = vmatprep.subr.mxu0 0.0
    %1076 = vmatpush1.msra.mxu0 0.0
    %1077 = vmatprep.subr.mxu0 0.0
    %1078 = vmatpush1.msra.mxu0 0.0
    %1079 = vmatprep.subr.mxu0 0.0
    %1080 = vmatpush1.msra.mxu0 0.0
    %1081 = vmatprep.subr.mxu0 0.0
    %1082 = vmatpush1.msra.mxu0 0.0
    %1083 = vmatprep.subr.mxu0 0.0
    %1084 = vmatpush1.msra.mxu0 0.0
    %1085 = vmatprep.subr.mxu0 0.0
    %1086 = vmatpush1.msra.mxu0 0.0
    %1087 = vmatprep.subr.mxu0 0.0
    %1088 = vmatpush1.msra.mxu0 0.0
    %1089 = vmatprep.subr.mxu0 0.0
    %1090 = vmatpush1.msra.mxu0 0.0
    %1091 = vmatprep.subr.mxu0 0.0
    %1092 = vmatpush1.msra.mxu0 0.0
    %1093 = vmatprep.subr.mxu0 0.0
    %1094 = vmatpush1.msra.mxu0 0.0
    %1095 = vmatprep.subr.mxu0 0.0
    %1096 = vmatpush1.msra.mxu0 0.0
    %1097 = vmatprep.subr.mxu0 0.0
    %1098 = vmatpush1.msra.mxu0 0.0
    %1099 = vmatprep.subr.mxu0 0.0
    %1100 = vmatpush1.msra.mxu0 0.0
    %1101 = vmatprep.subr.mxu0 0.0
    %1102 = vmatpush1.msra.mxu0 0.0
    %1103 = vmatprep.subr.mxu0 0.0
    %1104 = vmatpush1.msra.mxu0 0.0
    %1105 = vmatprep.subr.mxu0 0.0
    %1106 = vmatpush1.msra.mxu0 0.0
    %1107 = vmatprep.subr.mxu0 0.0
    %1108 = vmatpush1.msra.mxu0 0.0
    %1109 = vmatprep.subr.mxu0 0.0
    %1110 = vmatpush1.msra.mxu0 0.0
    %1111 = vmatprep.subr.mxu0 0.0
    %1112 = vmatpush1.msra.mxu0 0.0
    %1113 = vmatprep.subr.mxu0 0.0
    %1114 = vmatpush1.msra.mxu0 0.0
    %1115 = vmatprep.subr.mxu0 0.0
    %1116 = vmatpush1.msra.mxu0 0.0
    %1117 = vmatprep.subr.mxu0 0.0
    %1118 = vmatpush1.msra.mxu0 0.0
    %1119 = vmatprep.subr.mxu0 0.0
    %1120 = vmatpush1.msra.mxu0 0.0
    %1121 = vmatprep.mubr.f32.mxu0 0.0
    %1122 = vmatmul.mubr.f32.gmra.mrb[0].mxu0 %v1055
    %v1123 = vpop.f32.mrb[0].mxu0
    %v1124 = vadd.f32 %v1050, %v1123
    %v1125 = vpop.f32.mrb[0].mxu0
    %1126 = vdwg.mxu0
    %vm1127 = vcmask 64512
    %v1128 = vsel %vm1127, %v1124, -inf
    %1129 = vmax.xlane.f32.xlu0 %v1128
    %v1130 = vpop.xlane.xlu0 %1129
    %v1131 = vsub.f32 %v1124, %v1130
    %v1132 = vmul.f32 %v1131, 1.442695
    %v1133 = vpow.pop %v1132
    %v1134 = vsel %vm1127, %v1133, 0.0
    %1135 = vadd.xlane.f32.xlu0 %v1134
    %v1136 = vpop.xlane.xlu0 %1135
    %v1137 = vlog2.pop %v1136
    %v1138 = vmul.f32 %v1137, 0.6931472
    %v1139 = vsub.f32 %v1131, %v1138
    %1140 = vst.msk [vmem:[#allocation2] sm:$0xff] %vm1127, %v1139
    // Predicated region
    $region30: #{tpu_custom_call.1} parent=1 // pred_check
      _
    $region31: #{tpu_custom_call.1} parent=1 // pred_check_branch
      %1142 = sbr.rel (0) target = $region33
    $region32: #{tpu_custom_call.1} parent=1 // pred_region
      %s1144 = ssub.s32 128, 128
      %1145 = vsyncadd [#allocation3], %s1144
      %s1147 = sshll.u32 [#allocation2], 4
      %s1148 = int_to_ptr.vmem [resolvable:$true] %s1147
      %1150 = dma.vmem_to_hbm [thread:$0]  %s1148, 128, %s7, [#allocation3]
    $region33: #{tpu_custom_call.1} parent=1 // pred_fallthru
      _
    // Predicated region
    $region34: #{tpu_custom_call.1} parent=1 // pred_check
      _
    $region35: #{tpu_custom_call.1} parent=1 // pred_check_branch
      %1152 = sbr.rel (0) target = $region37
    $region36: #{tpu_custom_call.1} parent=1 // pred_region
      %1153 = dma.done [#allocation3], 128
    $region37: #{tpu_custom_call.1} parent=1 // pred_fallthru
      _
    %1154 = vsyncpa [#allocation3], 1

</llo_original>
